<compile_context>
chip_gen: v7x
topology: tpu7x:2x2x1
jax: 0.10.0
libtpu: 0.0.40
codegen_flags: <defaults>
</compile_context>

<pallas_src>
import jax
import jax.numpy as jnp
from jax.experimental import pallas as pl
from jax.experimental.pallas import tpu as pltpu


def _square_kernel(x_ref, o_ref):
    # x_ref, o_ref are 1-D f32[1] SMEM refs. The module's only compute —
    # an elementwise square of one scalar — happens here on the scalar path.
    v = x_ref[0]
    o_ref[0] = v * v


@jax.jit
def x2_forward(x_scalar: jax.Array) -> jax.Array:
    """Pallas equivalent of X2.forward(): returns x_scalar ** 2 (0-d f32).

    Jitted end-to-end so the (1,) reshape, the grid-less pallas_call, and the
    0-d index compile into a single dispatch.
    """
    x1d = jnp.asarray(x_scalar, dtype=jnp.float32).reshape(1)
    out = pl.pallas_call(
        _square_kernel,
        out_shape=jax.ShapeDtypeStruct((1,), jnp.float32),
        in_specs=[pl.BlockSpec(memory_space=pltpu.SMEM)],
        out_specs=pl.BlockSpec(memory_space=pltpu.SMEM),
    )(x1d)
    return out[0]


if __name__ == "__main__":
    # Deterministic parameter init matching nn.Parameter(torch.tensor(5000.)).
    # (PRNGKey(0) created per instructions; the init itself is the fixed
    # constant 5000.0, exactly as in the PyTorch module.)
    _ = jax.random.PRNGKey(0)
    x_param = jnp.float32(5000.0)

    result = x2_forward(x_param)
    jax.block_until_ready(result)

    expected = jnp.float32(5000.0) ** 2  # 25e6, exactly representable in f32
    assert result.shape == ()
    assert result.dtype == jnp.float32
    assert jnp.allclose(result, expected), (result, expected)
    print("KERNEL_OK")
</pallas_src>

<mosaic_0001>
module attributes {stable_mosaic.version = 11 : i64} {
  func.func @_square_kernel(%arg0: memref<1xf32, #tpu.memory_space<smem>>, %arg1: memref<1xf32, #tpu.memory_space<smem>>) attributes {dimension_semantics = [], scalar_prefetch = 0 : i64, scratch_operands = 0 : i64, tpu.core_type = #tpu.core_type<tc>} {
    %c0 = arith.constant 0 : index
    %0 = memref.load %arg0[%c0] : memref<1xf32, #tpu.memory_space<smem>>
    %1 = arith.mulf %0, %0 : f32
    %c0_0 = arith.constant 0 : index
    %2 = memref.load %arg1[%c0_0] : memref<1xf32, #tpu.memory_space<smem>>
    memref.store %1, %arg1[%c0_0] : memref<1xf32, #tpu.memory_space<smem>>
    return
  }
}

</mosaic_0001>

<llo_original>
// kernel: x2_forward.1
$region0: #{x2_forward.1}
  #allocation0 [shape = 'u32[]', space=smem, size = 0x4, offset = 0x4, fixed_abs, tag = 'smem constant byte address 0x4 - core index']
  #allocation1 [shape = 'u32[144,128]{1,0:T(1,128)}', space=vmem, size = 0x12000, scoped, tag = 'internal scratch']
  #allocation2 [shape = 'f32[1]{0:T(128)S(6)}', space=smem, size = 0x200, scoped, tag = 'scoped memory for x2_forward.1']
  %s0 = inlined_call_operand.<no memory space> [shape: f32[1], index: 0, kind: input, shape index: {}]
  %s1 = inlined_call_operand.hbm [shape: f32[1], index: 1, kind: output, shape index: {}]
  %s2 = sld [smem:[#allocation0]]
  $region14: #{x2_forward.1} parent=0
    _
  %s4 = ssub.s32 1, %s2
  %s5 = scalar_select 0, %s4, %s2
  %6 = sst [smem:[#allocation2]] %s0
  $region1: #{x2_forward.1} parent=0
    #allocation3 [shape = 'u8[512]{0}', space=smem, size = 0x200, scoped, tag = 'output window, operand 0, single buffered']
    #allocation4 [shape = 's32[1]{0}', space=sflag, size = 0x4, scoped, tag = 'scoped memory for x2_forward.1']
    %7 = vsyncpa [#allocation4], 0
    // Predicated region
    $region2: #{x2_forward.1} parent=1 // pred_check
      _
    $region3: #{x2_forward.1} parent=1 // pred_check_branch
      %9 = sbr.rel (0) target = $region5
    $region4: #{x2_forward.1} parent=1 // pred_region
      _
    $region5: #{x2_forward.1} parent=1 // pred_fallthru
      _
    %s10 = sld [smem:[#allocation2]]
    %s11 = smul.f32 %s10, %s10
    %s12 = scalar_lea.smem [#allocation3], 0
    %13 = sst [smem:[%s12]] %s11
    // Predicated region
    $region6: #{x2_forward.1} parent=1 // pred_check
      _
    $region7: #{x2_forward.1} parent=1 // pred_check_branch
      %15 = sbr.rel (0) target = $region9
    $region8: #{x2_forward.1} parent=1 // pred_region
      %s17 = ssub.s32 16, 16
      %18 = vsyncadd [#allocation4], %s17
      %21 = dma.smem_to_hbm [#allocation3], 16, %s1, [#allocation4]
    $region9: #{x2_forward.1} parent=1 // pred_fallthru
      _
    // Predicated region
    $region10: #{x2_forward.1} parent=1 // pred_check
      _
    $region11: #{x2_forward.1} parent=1 // pred_check_branch
      %23 = sbr.rel (0) target = $region13
    $region12: #{x2_forward.1} parent=1 // pred_region
      %24 = dma.done [#allocation4], 16
    $region13: #{x2_forward.1} parent=1 // pred_fallthru
      _
    %25 = sfence
    %26 = vsyncpa [#allocation4], 1

</llo_original>
